<compile_context>
chip_gen: v7x
topology: tpu7x:2x2x1
jax: 0.10.0
libtpu: 0.0.40
codegen_flags: <defaults>
</compile_context>

<pallas_src>
import jax
import jax.numpy as jnp
from jax.experimental import pallas as pl
from jax.experimental.pallas import tpu as pltpu

# Small, shape-consistent stand-ins for the module hyper-parameters.
TEXT_EMBED_DIM = 128   # text_embed_dim (512 in the original __init__ default)
EMBED_DIM_POS = 12     # embed_dim_position (module-level global = 12)
MAX_TEXT_LEN = 16      # max_text_len


def _round_up(v: int, m: int) -> int:
    return ((v + m - 1) // m) * m


def _fc_embed2_kernel(x_ref, w_ref, b_ref, out_ref):
    """Linear(1 -> E) applied row-wise as a VPU broadcast multiply-add.

    x_ref   : (TILE_ROWS, 1)   float32  conditioning scalars (flattened B*L rows)
    w_ref   : (1, E_pad)       float32  fc_embed2.weight, zero-padded to lane width
    b_ref   : (1, E_pad)       float32  fc_embed2.bias,   zero-padded to lane width
    out_ref : (TILE_ROWS, E_pad)        lane-dense output tile
    """
    # Pure VPU work (in_features == 1, so no MXU matmul); single unmasked
    # lane-dense store per tile.
    out_ref[...] = x_ref[...] * w_ref[...] + b_ref[...]


def protein_designer_text_embeds(x, fc2_w, fc2_b, pos_emb_table,
                                 *, max_text_len=None, tile_rows=1024):
    """Computes the text-conditioning embedding of ProteinDesigner_A.forward.

    x             : (B, L) float32                        raw conditioning scalars
    fc2_w         : (E_text, 1) float32                   fc_embed2.weight (PyTorch layout)
    fc2_b         : (E_text,)   float32                   fc_embed2.bias
    pos_emb_table : (max_text_len + 1, E_pos) float32     pos_emb_x.weight
    returns       : (B, L, E_text + E_pos) float32
    """
    B, L = x.shape
    e_text = fc2_w.shape[0]
    e_pos = pos_emb_table.shape[1]
    if max_text_len is None:
        max_text_len = pos_emb_table.shape[0] - 1
    if L > max_text_len:
        raise ValueError(
            f"sequence length L={L} exceeds max_text_len={max_text_len}")

    # ---- flatten (B, L) -> rows, make the embed dim lane-dense (mult. of 128) ----
    rows = B * L
    e_pad = _round_up(e_text, 128)

    # Row-tile sizing: multiple of 8 sublanes; clamp to the (row-padded) problem.
    # Default 1024 keeps double-buffered in+out tiles << 32 MiB scoped VMEM even
    # at the production E_text=512 (out tile ~2 MiB f32), safe on v7x as well.
    tile = _round_up(min(tile_rows, _round_up(rows, 8)), 8)
    rows_pad = _round_up(rows, tile)

    x_rows = x.reshape(rows, 1).astype(jnp.float32)
    if rows_pad != rows:
        x_rows = jnp.pad(x_rows, ((0, rows_pad - rows), (0, 0)))

    w_row = jnp.zeros((1, e_pad), jnp.float32).at[0, :e_text].set(
        fc2_w.reshape(-1).astype(jnp.float32))
    b_row = jnp.zeros((1, e_pad), jnp.float32).at[0, :e_text].set(
        fc2_b.astype(jnp.float32))

    grid = (rows_pad // tile,)

    text_pad = pl.pallas_call(
        _fc_embed2_kernel,
        out_shape=jax.ShapeDtypeStruct((rows_pad, e_pad), jnp.float32),
        grid=grid,
        in_specs=[
            pl.BlockSpec((tile, 1), lambda i: (i, 0)),
            pl.BlockSpec((1, e_pad), lambda i: (0, 0)),
            pl.BlockSpec((1, e_pad), lambda i: (0, 0)),
        ],
        out_specs=pl.BlockSpec((tile, e_pad), lambda i: (i, 0)),
        compiler_params=pltpu.CompilerParams(
            dimension_semantics=("parallel",)),
    )(x_rows, w_row, b_row)

    text = text_pad[:rows, :e_text].reshape(B, L, e_text)

    # Positional embedding: pos_matrix_i = [1..max_text_len]; zeroing rows >= L
    # and slicing [:, :L, :] is exactly embedding rows 1..L.  Batch-invariant,
    # so broadcast lazily here instead of storing it B times from the kernel.
    pos_rows = pos_emb_table[1:L + 1, :].astype(jnp.float32)        # (L, E_pos)
    pos_b = jnp.broadcast_to(pos_rows[None, :, :], (B, L, e_pos))   # (B, L, E_pos)

    return jnp.concatenate([text, pos_b], axis=-1)                  # (B, L, E_text+E_pos)


def _reference(x, fc2_w, fc2_b, pos_emb_table, max_text_len):
    """Pure-JAX reference that mirrors the PyTorch forward (steps 1-4) literally,
    including the zero-then-slice positional masking."""
    B, L = x.shape
    e_pos = pos_emb_table.shape[1]
    text = (x[:, :, None].astype(jnp.float32)
            * fc2_w.reshape(-1)[None, None, :]
            + fc2_b[None, None, :])
    pos_idx = jnp.arange(1, max_text_len + 1)                       # pos_matrix_i
    pos = pos_emb_table[pos_idx]                                    # (max_text_len, E_pos)
    pos = jnp.broadcast_to(pos[None], (B, max_text_len, e_pos))
    pos = pos.at[:, L:, :].set(0.0)                                 # pos_emb_x[:, L:, :] = 0
    pos = pos[:, :L, :]                                             # [:, :L, :]
    return jnp.concatenate([text, pos], axis=-1)


if __name__ == "__main__":
    key = jax.random.PRNGKey(0)
    k_x, k_w, k_b, k_pos = jax.random.split(key, 4)

    B, L = 2, 8  # batch, conditioning sequence length (L <= MAX_TEXT_LEN)

    x = jax.random.normal(k_x, (B, L), dtype=jnp.float32)
    fc2_w = jax.random.normal(k_w, (TEXT_EMBED_DIM, 1), dtype=jnp.float32) * 0.1
    fc2_b = jax.random.normal(k_b, (TEXT_EMBED_DIM,), dtype=jnp.float32) * 0.1
    pos_emb_table = jax.random.normal(
        k_pos, (MAX_TEXT_LEN + 1, EMBED_DIM_POS), dtype=jnp.float32) * 0.1

    # tile_rows=8 at these tiny demo shapes -> grid=(2,), exercising the tiled
    # parallel row grid; at production sizes the default tile_rows=1024 applies.
    out = protein_designer_text_embeds(
        x, fc2_w, fc2_b, pos_emb_table, max_text_len=MAX_TEXT_LEN, tile_rows=8)
    out = jax.block_until_ready(out)

    ref = _reference(x, fc2_w, fc2_b, pos_emb_table, MAX_TEXT_LEN)
    assert out.shape == (B, L, TEXT_EMBED_DIM + EMBED_DIM_POS), out.shape
    assert jnp.allclose(out, ref, atol=1e-5, rtol=1e-5), "mismatch vs reference"

    print("KERNEL_OK")
</pallas_src>

<mosaic_0001>
module attributes {stable_mosaic.version = 11 : i64} {
  func.func @_fc_embed2_kernel(%arg0: i32, %arg1: memref<8x1xf32, #tpu.memory_space<vmem>>, %arg2: memref<1x128xf32, #tpu.memory_space<vmem>>, %arg3: memref<1x128xf32, #tpu.memory_space<vmem>>, %arg4: memref<8x128xf32, #tpu.memory_space<vmem>>) attributes {dimension_semantics = [#tpu.dimension_semantics<parallel>], iteration_bounds = array<i64: 2>, scalar_prefetch = 0 : i64, scratch_operands = 0 : i64, tpu.core_type = #tpu.core_type<tc>, window_params = [{transform_indices = @transform_0, window_bounds = array<i64: 8, 1>}, {pipeline_mode = #tpu.pipeline_mode<synchronous>, transform_indices = @transform_1, window_bounds = array<i64: 1, 128>}, {pipeline_mode = #tpu.pipeline_mode<synchronous>, transform_indices = @transform_2, window_bounds = array<i64: 1, 128>}, {transform_indices = @transform_3, window_bounds = array<i64: 8, 128>}]} {
    %c0 = arith.constant 0 : index
    %c0_0 = arith.constant 0 : index
    %0 = vector.load %arg1[%c0, %c0_0] : memref<8x1xf32, #tpu.memory_space<vmem>>, vector<8x1xf32>
    %c0_1 = arith.constant 0 : index
    %c0_2 = arith.constant 0 : index
    %1 = vector.load %arg2[%c0_1, %c0_2] : memref<1x128xf32, #tpu.memory_space<vmem>>, vector<1x128xf32>
    %2 = vector.broadcast %0 : vector<8x1xf32> to vector<8x128xf32>
    %3 = vector.broadcast %1 : vector<1x128xf32> to vector<8x128xf32>
    %4 = arith.mulf %2, %3 : vector<8x128xf32>
    %c0_3 = arith.constant 0 : index
    %c0_4 = arith.constant 0 : index
    %5 = vector.load %arg3[%c0_3, %c0_4] : memref<1x128xf32, #tpu.memory_space<vmem>>, vector<1x128xf32>
    %6 = vector.broadcast %5 : vector<1x128xf32> to vector<8x128xf32>
    %7 = arith.addf %4, %6 : vector<8x128xf32>
    %c0_5 = arith.constant 0 : index
    %c0_6 = arith.constant 0 : index
    %8 = vector.load %arg4[%c0_5, %c0_6] : memref<8x128xf32, #tpu.memory_space<vmem>>, vector<8x128xf32>
    tpu.vector_store %arg4[%c0_5, %c0_6], %7 {strides = array<i32>} : memref<8x128xf32, #tpu.memory_space<vmem>>, vector<8x128xf32>,
    return
  }
  func.func @transform_0(%arg0: i32) -> (i32, i32) {
    %c0_i32 = arith.constant 0 : i32
    %c0_i32_0 = arith.constant 0 : i32
    return %arg0, %c0_i32 : i32, i32
  }
  func.func @transform_1(%arg0: i32) -> (i32, i32) {
    %c0_i32 = arith.constant 0 : i32
    %c0_i32_0 = arith.constant 0 : i32
    %c0_i32_1 = arith.constant 0 : i32
    return %c0_i32, %c0_i32_0 : i32, i32
  }
  func.func @transform_2(%arg0: i32) -> (i32, i32) {
    %c0_i32 = arith.constant 0 : i32
    %c0_i32_0 = arith.constant 0 : i32
    %c0_i32_1 = arith.constant 0 : i32
    return %c0_i32, %c0_i32_0 : i32, i32
  }
  func.func @transform_3(%arg0: i32) -> (i32, i32) {
    %c0_i32 = arith.constant 0 : i32
    %c0_i32_0 = arith.constant 0 : i32
    return %arg0, %c0_i32 : i32, i32
  }
}

</mosaic_0001>

<llo_original>
// kernel: tpu_custom_call.1
$region0: #{tpu_custom_call.1}
  #allocation0 [shape = 'u32[]', space=smem, size = 0x4, offset = 0x4, fixed_abs, tag = 'smem constant byte address 0x4 - core index']
  #allocation1 [shape = 'u32[144,128]{1,0:T(1,128)}', space=vmem, size = 0x12000, scoped, tag = 'internal scratch']
  %s0 = inlined_call_operand.vmem [shape: f32[16,1], index: 0, kind: input, shape index: {}]
  %s1 = inlined_call_operand.vmem [shape: f32[1,128], index: 1, kind: input, shape index: {}]
  %s2 = inlined_call_operand.vmem [shape: f32[1,128], index: 2, kind: input, shape index: {}]
  %s3 = inlined_call_operand.hbm [shape: f32[16,128], index: 3, kind: output, shape index: {}]
  %s4 = sld [smem:[#allocation0]]
  $region45: #{tpu_custom_call.1} parent=0
    _
  %s6 = ssub.s32 1, %s4
  %s7 = scalar_select 0, %s6, %s4
  $region1: #{tpu_custom_call.1} parent=0
    #allocation2 [shape = 'u8[8192]{0}', space=vmem, size = 0x2000, scoped, tag = 'output window, operand 0']
    #allocation3 [shape = 's32[2]{0}', space=sflag, size = 0x8, scoped, tag = 'scoped memory for tpu_custom_call.1']
    %8 = vsyncpa [#allocation3], 0
    %s9 = scalar_lea.sflag [#allocation3], 1
    %10 = vsyncpa %s9, 0
    loop: start=0, step=1, limit=4
    $region2: #{tpu_custom_call.1} parent=1 // loop_pre_header
      _
    $region3: #{tpu_custom_call.1} parent=1 // loop_header
      %s12 = sphi 0, %s16
      %p13 = scmp.ge.s32.totalorder %s12, 4
      %s22 = sphi 0, %s24
      %s25 = sphi 0, %s22
      %s26 = sphi 0, %s25
      %s42 = sphi 0, %s26
      %s46 = sphi 0, %s46
      %s48 = sphi 0, %s46
      %s49 = sphi 0, %s48
      %s63 = sphi 0, %s49
      %s67 = sphi 0, %s67
      %s69 = sphi 0, %s67
      %s70 = sphi 0, %s69
      %s84 = sphi 0, %s70
      %s90 = sphi 0, %s92
      %s93 = sphi 0, %s90
      %s94 = sphi 0, %s93
      %s110 = sphi 0, %s94
    $region4: #{tpu_custom_call.1} parent=1 // loop_header_branch
      %15 = sbr.rel (%p13) target = $region8
    $region5: #{tpu_custom_call.1} parent=1 // loop_body
      %s17 = ssub.s32 %s12, 1
      %s18 = ssub.s32 %s12, 2
      %s19 = sadd.s32 %s12, 1
      %s20 = ssub.s32 %s12, %s19
      %p21 = scmp.eq.s32.totalorder %s20, 0
      %s23 = sadd.s32 %s22, 1
      %s24 = scalar_select %p21, %s22, %s23
      %p27 = pneg %p21
      %p28 = scmp.eq.s32.totalorder %s12, 1
      %p29 = por %p27, %p28
      %p30 = scmp.ne.s32.totalorder %s22, %s25
      %p31 = scmp.eq.s32.totalorder %s12, 0
      %p32 = por %p30, %p31
      %p33 = scmp.ne.s32.totalorder %s22, %s25
      %p34 = scmp.eq.s32.totalorder %s17, 1
      %p35 = por %p33, %p34
      %p36 = scmp.ne.s32.totalorder %s25, %s26
      %p37 = scmp.eq.s32.totalorder %s17, 0
      %p38 = por %p36, %p37
      %p39 = scmp.ne.s32.totalorder %s25, %s26
      %p40 = scmp.eq.s32.totalorder %s18, 1
      %p41 = por %p39, %p40
      %p43 = scmp.ne.s32.totalorder %s26, %s42
      %p44 = scmp.eq.s32.totalorder %s18, 0
      %p45 = por %p43, %p44
      %s47 = sadd.s32 %s46, 1
      %p50 = scmp.eq.s32.totalorder %s12, 1
      %p51 = scmp.ne.s32.totalorder %s46, %s48
      %p52 = scmp.eq.s32.totalorder %s12, 0
      %p53 = por %p51, %p52
      %p54 = scmp.ne.s32.totalorder %s46, %s48
      %p55 = scmp.eq.s32.totalorder %s17, 1
      %p56 = por %p54, %p55
      %p57 = scmp.ne.s32.totalorder %s48, %s49
      %p58 = scmp.eq.s32.totalorder %s17, 0
      %p59 = por %p57, %p58
      %p60 = scmp.ne.s32.totalorder %s48, %s49
      %p61 = scmp.eq.s32.totalorder %s18, 1
      %p62 = por %p60, %p61
      %p64 = scmp.ne.s32.totalorder %s49, %s63
      %p65 = scmp.eq.s32.totalorder %s18, 0
      %p66 = por %p64, %p65
      %s68 = sadd.s32 %s67, 1
      %p71 = scmp.eq.s32.totalorder %s12, 1
      %p72 = scmp.ne.s32.totalorder %s67, %s69
      %p73 = scmp.eq.s32.totalorder %s12, 0
      %p74 = por %p72, %p73
      %p75 = scmp.ne.s32.totalorder %s67, %s69
      %p76 = scmp.eq.s32.totalorder %s17, 1
      %p77 = por %p75, %p76
      %p78 = scmp.ne.s32.totalorder %s69, %s70
      %p79 = scmp.eq.s32.totalorder %s17, 0
      %p80 = por %p78, %p79
      %p81 = scmp.ne.s32.totalorder %s69, %s70
      %p82 = scmp.eq.s32.totalorder %s18, 1
      %p83 = por %p81, %p82
      %p85 = scmp.ne.s32.totalorder %s70, %s84
      %p86 = scmp.eq.s32.totalorder %s18, 0
      %p87 = por %p85, %p86
      %s88 = ssub.s32 %s12, %s19
      %p89 = scmp.eq.s32.totalorder %s88, 0
      %s91 = sadd.s32 %s90, 1
      %s92 = scalar_select %p89, %s90, %s91
      %p95 = pneg %p89
      %p96 = scmp.eq.s32.totalorder %s12, 1
      %p97 = por %p95, %p96
      %p98 = scmp.ne.s32.totalorder %s90, %s93
      %p99 = scmp.eq.s32.totalorder %s12, 0
      %p100 = por %p98, %p99
      %p101 = scmp.ne.s32.totalorder %s90, %s93
      %p102 = scmp.eq.s32.totalorder %s17, 1
      %p103 = por %p101, %p102
      %p104 = scmp.ne.s32.totalorder %s93, %s94
      %p105 = scmp.eq.s32.totalorder %s17, 0
      %p106 = por %p104, %p105
      %p107 = scmp.ne.s32.totalorder %s93, %s94
      %p108 = scmp.eq.s32.totalorder %s18, 1
      %p109 = por %p107, %p108
      %p111 = scmp.ne.s32.totalorder %s94, %s110
      %p112 = scmp.eq.s32.totalorder %s18, 0
      %p113 = por %p111, %p112
      %p114 = scmp.le.s32.totalorder 1, %s12
      %p115 = scmp.lt.s32.totalorder %s12, 3
      %p116 = pnand %p114, %p115
      %p117 = pneg %p116
      // Predicated region
      $region9: #{tpu_custom_call.1} parent=5 // pred_check
        _
      $region10: #{tpu_custom_call.1} parent=5 // pred_check_branch
        %119 = sbr.rel (%p116) target = $region12
      $region11: #{tpu_custom_call.1} parent=5 // pred_region
        %s120 = ssub.s32 %s12, 1
        // Predicated region
        $region13: #{tpu_custom_call.1} parent=11 // pred_check
          %p121 = pneg %p59
        $region14: #{tpu_custom_call.1} parent=11 // pred_check_branch
          %123 = sbr.rel (%p121) target = $region16
        $region15: #{tpu_custom_call.1} parent=11 // pred_region
          _
        $region16: #{tpu_custom_call.1} parent=11 // pred_fallthru
          _
        // Predicated region
        $region17: #{tpu_custom_call.1} parent=11 // pred_check
          %p124 = pneg %p80
        $region18: #{tpu_custom_call.1} parent=11 // pred_check_branch
          %126 = sbr.rel (%p124) target = $region20
        $region19: #{tpu_custom_call.1} parent=11 // pred_region
          _
        $region20: #{tpu_custom_call.1} parent=11 // pred_fallthru
          _
      $region12: #{tpu_custom_call.1} parent=5 // pred_fallthru
        _
      %p127 = scmp.lt.s32.totalorder %s12, 2
      // Predicated region
      $region21: #{tpu_custom_call.1} parent=5 // pred_check
        %p128 = pneg %p127
      $region22: #{tpu_custom_call.1} parent=5 // pred_check_branch
        %130 = sbr.rel (%p128) target = $region24
      $region23: #{tpu_custom_call.1} parent=5 // pred_region
        // Predicated region
        $region25: #{tpu_custom_call.1} parent=23 // pred_check
          %p131 = pneg %p32
        $region26: #{tpu_custom_call.1} parent=23 // pred_check_branch
          %133 = sbr.rel (%p131) target = $region28
        $region27: #{tpu_custom_call.1} parent=23 // pred_region
          %p134 = scmp.lt.s32.totalorder %s12, 1
          %s135 = scalar_select %p134, %s12, 1
          %s136 = smul.addr %s135, 8
          %s137 = scalar_lea.vmem %s0, %s136
        $region28: #{tpu_custom_call.1} parent=23 // pred_fallthru
          _
      $region24: #{tpu_custom_call.1} parent=5 // pred_fallthru
        _
      %p138 = scmp.le.s32.totalorder 1, %s12
      %p139 = scmp.lt.s32.totalorder %s12, 3
      %p140 = pnand %p138, %p139
      %p141 = pneg %p140
      // Predicated region
      $region29: #{tpu_custom_call.1} parent=5 // pred_check
        _
      $region30: #{tpu_custom_call.1} parent=5 // pred_check_branch
        %143 = sbr.rel (%p140) target = $region32
      $region31: #{tpu_custom_call.1} parent=5 // pred_region
        %s144 = ssub.s32 %s12, 1
        %p145 = scmp.lt.s32.totalorder %s17, 1
        %s146 = scalar_select %p145, %s17, 1
        %s147 = smul.addr %s146, 8
        %s148 = scalar_lea.vmem %s0, %s147
        %p149 = pneg %p38
        %p150 = pneg %p35
        %p151 = pneg %p59
        %p152 = pneg %p56
        %p153 = pneg %p80
        %p154 = pneg %p77
        %p155 = pneg %p106
        %p156 = pneg %p103
        %s157 = sand.u32 %s93, 1
        %s158 = scalar_lea.sflag [#allocation3], %s157
        %s159 = sand.u32 %s93, 1
        %s160 = smul.addr %s159, 8
        %s161 = scalar_lea.vmem [#allocation2], %s160
        %p162 = scmp.lt.s32.totalorder %s17, 1
        %s163 = scalar_select %p162, %s17, 1
        %s164 = smul.addr %s163, 8
        %s165 = scalar_lea.vmem %s0, %s164
        %v166 = vld [vmem:[%s165] sm:$0xff]
        %v167 = vld [vmem:[%s1] sm:$0x1]
        %169 = vset.pattern.permute.xlu0 0
        %170 = vperm.xlu0 %169, %v166
        %v171 = vpop.permute.xlu0 %170
        %v174 = vlaneseq
        %v175 = vshrl.u32 %v174, 7
        %v176 = vsub.s32 0, %v175
        %v177 = vrot.slane %v167, %v176
        %v179 = vmul.f32 %v171, %v177
        %v180 = vld [vmem:[%s2] sm:$0x1]
        %v182 = vlaneseq
        %v183 = vshrl.u32 %v182, 7
        %v184 = vsub.s32 0, %v183
        %v185 = vrot.slane %v180, %v184
        %v187 = vadd.f32 %v179, %v185
        %188 = vst [vmem:[%s161] sm:$0xff] %v187
        %s189 = sand.u32 %s93, 1
        %s190 = scalar_lea.sflag [#allocation3], %s189
        %s191 = sand.u32 %s93, 1
        %s192 = smul.addr %s191, 8
        %s193 = scalar_lea.vmem [#allocation2], %s192
        // Predicated region
        $region33: #{tpu_custom_call.1} parent=31 // pred_check
          %p194 = pneg %p103
        $region34: #{tpu_custom_call.1} parent=31 // pred_check_branch
          %196 = sbr.rel (%p194) target = $region36
        $region35: #{tpu_custom_call.1} parent=31 // pred_region
          %s198 = ssub.s32 128, 128
          %199 = vsyncadd %s190, %s198
          %s200 = smul.addr %s17, 128
          %s201 = scalar_lea.hbm %s3, %s200
          %s203 = sshll.u32 %s193, 4
          %s204 = int_to_ptr.vmem [resolvable:$true] %s203
          %206 = dma.vmem_to_hbm [thread:$0]  %s204, 128, %s201, %s190
        $region36: #{tpu_custom_call.1} parent=31 // pred_fallthru
          _
      $region32: #{tpu_custom_call.1} parent=5 // pred_fallthru
        _
      %p207 = scmp.le.s32.totalorder 2, %s12
      // Predicated region
      $region37: #{tpu_custom_call.1} parent=5 // pred_check
        %p208 = pneg %p207
      $region38: #{tpu_custom_call.1} parent=5 // pred_check_branch
        %210 = sbr.rel (%p208) target = $region40
      $region39: #{tpu_custom_call.1} parent=5 // pred_region
        %s211 = ssub.s32 %s12, 2
        // Predicated region
        $region41: #{tpu_custom_call.1} parent=39 // pred_check
          %p212 = pneg %p109
        $region42: #{tpu_custom_call.1} parent=39 // pred_check_branch
          %214 = sbr.rel (%p212) target = $region44
        $region43: #{tpu_custom_call.1} parent=39 // pred_region
          %s215 = sand.u32 %s94, 1
          %s216 = scalar_lea.sflag [#allocation3], %s215
          %s217 = sand.u32 %s94, 1
          %s218 = smul.addr %s217, 8
          %s219 = scalar_lea.vmem [#allocation2], %s218
          %220 = dma.done %s216, 128
        $region44: #{tpu_custom_call.1} parent=39 // pred_fallthru
          _
      $region40: #{tpu_custom_call.1} parent=5 // pred_fallthru
        _
    $region6: #{tpu_custom_call.1} parent=1 // loop_footer
      %s16 = sadd.s32 1, %s12
    $region7: #{tpu_custom_call.1} parent=1 // loop_footer_branch
      %11 = sbr.rel target = $region3
    $region8: #{tpu_custom_call.1} parent=1 // loop_exit
      _
    %221 = vsyncpa [#allocation3], 1
    %s222 = scalar_lea.sflag [#allocation3], 1
    %223 = vsyncpa %s222, 1

</llo_original>
